<compile_context>
chip_gen: v5e
topology: v5e:2x2
jax: 0.10.0
libtpu: 0.0.40
codegen_flags: <defaults>
</compile_context>

<pallas_src>
import jax
import jax.numpy as jnp
import numpy as np
from jax.experimental import pallas as pl
from jax.experimental.pallas import tpu as pltpu


def _vmem_limit_and_budget():
    """(vmem_limit_bytes, per-x-block budget in bytes) for this chip."""
    try:
        vmem = pltpu.get_tpu_info().vmem_capacity_bytes
    except Exception:
        vmem = 64 * 1024 * 1024
    if vmem <= (64 << 20):            # v7x: 64 MiB VMEM per TensorCore
        return 48 << 20, 8 << 20
    return 64 << 20, 12 << 20         # v5e / v6e: 128 MiB VMEM


def _choose_hw_tile(HW_pad, C, itemsize, budget_bytes):
    """Largest lane-aligned (multiple-of-128) divisor of HW_pad whose
    (C, tile) block fits the budget.  HW_pad is always a multiple of 128."""
    cap = min(HW_pad, max(128, budget_bytes // max(1, C * itemsize)))
    best = 128
    t = 128
    while t <= cap:
        if HW_pad % t == 0:
            best = t
        t += 128
    return best


def _accum_lane_chunks(x_ref, acc_ref, extent):
    """acc_ref (1, C, 128) f32 += per-channel partial sums of x_ref[:, :, :extent].

    Pure VPU adds over 128-lane chunks (per-chunk f32 cast only), no per-tile
    XLU reduce and no relayout; the single cross-lane reduce happens later."""
    n_full, rem = divmod(extent, 128)
    if n_full > 0:
        if n_full <= 32:               # short: static unroll for LLO visibility
            for i in range(n_full):
                acc_ref[...] += x_ref[:, :, pl.ds(i * 128, 128)].astype(jnp.float32)
        else:                          # long: bounded code size via fori_loop
            def body(i, carry):
                off = pl.multiple_of(i * 128, 128)
                acc_ref[...] += x_ref[:, :, pl.ds(off, 128)].astype(jnp.float32)
                return carry
            jax.lax.fori_loop(0, n_full, body, 0, unroll=4)
    if rem:
        acc_ref[:, :, pl.ds(0, rem)] += (
            x_ref[:, :, pl.ds(n_full * 128, rem)].astype(jnp.float32))


# --------------------------------------------------------------------------- #
# Fused single-pass kernel: mean + MLP + scale, one read / one write of x.
# --------------------------------------------------------------------------- #
def _make_fused_kernel(inv_hw, HW):
    def kernel(x_ref, w1_ref, b1_ref, w2_ref, b2_ref, out_ref, acc_ref):
        # x_ref/out_ref: (1, C, HW); w1: (C, Cr); b1: (1, Cr); w2: (Cr, C);
        # b2: (1, C); acc_ref: VMEM (1, C, 128) f32.
        acc_ref[...] = jnp.zeros_like(acc_ref)
        _accum_lane_chunks(x_ref, acc_ref, HW)

        q = jnp.sum(acc_ref[...], axis=2) * inv_hw                       # (1, C)
        h = jnp.dot(q, w1_ref[...],
                    preferred_element_type=jnp.float32) + b1_ref[...]
        h = jnp.maximum(h, 0.0)                                          # ReLU
        g = jnp.dot(h, w2_ref[...],
                    preferred_element_type=jnp.float32) + b2_ref[...]
        g = jax.nn.sigmoid(g).astype(out_ref.dtype)                      # (1, C)
        out_ref[...] = (x_ref[...] * g[:, :, None]).astype(out_ref.dtype)

    return kernel


# --------------------------------------------------------------------------- #
# Two-pass fallback kernels.
# --------------------------------------------------------------------------- #
def _make_mean_kernel(inv_hw, hw_tile):
    def kernel(x_ref, mean_ref, acc_ref):
        # x_ref: (1, C, hw_tile); mean_ref: (1, C, 1) f32; acc_ref: (1, C, 128) f32.
        hw = pl.program_id(1)

        @pl.when(hw == 0)
        def _():
            acc_ref[...] = jnp.zeros_like(acc_ref)

        _accum_lane_chunks(x_ref, acc_ref, hw_tile)

        @pl.when(hw == pl.num_programs(1) - 1)
        def _():
            mean_ref[...] = (jnp.sum(acc_ref[...], axis=2, keepdims=True)
                             * inv_hw).astype(mean_ref.dtype)

    return kernel


def _scale_kernel(x_ref, g_ref, out_ref):
    # x_ref/out_ref: (1, C, hw_tile); g_ref: (1, C, 1) in x.dtype
    # -> C on sublanes for both; plain lane broadcast, pure VPU + vst.
    out_ref[...] = (x_ref[...] * g_ref[...]).astype(out_ref.dtype)


# --------------------------------------------------------------------------- #
# Wrapper.
# --------------------------------------------------------------------------- #
def sae_forward(x, w1, b1, w2, b2, *, hw_tile=None, allow_fused=True):
    """x: (B, C, H, W); w1: (C, Cr); b1: (Cr,); w2: (Cr, C); b2: (C,)."""
    B, C, H, W = x.shape
    Cr = w1.shape[1]
    HW = H * W
    itemsize = jnp.dtype(x.dtype).itemsize
    x3 = x.reshape(B, C, HW)
    b1_2d = b1.reshape(1, Cr)
    b2_2d = b2.reshape(1, C)

    vmem_limit, block_budget = _vmem_limit_and_budget()

    slice_bytes = C * HW * itemsize
    weights_bytes = 4 * (w1.size + w2.size + b1.size + b2.size)
    acc_bytes = C * 128 * 4
    fused_ok = (allow_fused and hw_tile is None and
                4 * slice_bytes + weights_bytes + acc_bytes + (2 << 20) <= vmem_limit)

    if fused_ok:
        out3 = pl.pallas_call(
            _make_fused_kernel(1.0 / HW, HW),
            out_shape=jax.ShapeDtypeStruct((B, C, HW), x.dtype),
            grid_spec=pltpu.PrefetchScalarGridSpec(
                num_scalar_prefetch=0,
                grid=(B,),
                in_specs=[
                    pl.BlockSpec((1, C, HW), lambda b: (b, 0, 0)),
                    pl.BlockSpec((C, Cr), lambda b: (0, 0)),
                    pl.BlockSpec((1, Cr), lambda b: (0, 0)),
                    pl.BlockSpec((Cr, C), lambda b: (0, 0)),
                    pl.BlockSpec((1, C), lambda b: (0, 0)),
                ],
                out_specs=pl.BlockSpec((1, C, HW), lambda b: (b, 0, 0)),
                scratch_shapes=[pltpu.VMEM((1, C, 128), jnp.float32)],
            ),
            compiler_params=pltpu.CompilerParams(
                dimension_semantics=("parallel",),
                vmem_limit_bytes=vmem_limit,
            ),
        )(x3, w1, b1_2d, w2, b2_2d)
        return out3.reshape(B, C, H, W)

    # ------------------- Two-pass fallback (oversized slices) ------------- #
    # Pad HW to a lane multiple so every spatial tile is 128-aligned (zero pad
    # does not perturb the channel sums; we divide by the true HW).
    HW_pad = ((HW + 127) // 128) * 128
    x3p = x3 if HW_pad == HW else jnp.pad(x3, ((0, 0), (0, 0), (0, HW_pad - HW)))

    if hw_tile is None:
        hw_tile = _choose_hw_tile(HW_pad, C, itemsize, block_budget)
    assert HW_pad % hw_tile == 0 and hw_tile % 128 == 0, (HW_pad, hw_tile)
    n_hw = HW_pad // hw_tile

    # Pass 1: squeeze (global average pool) -> per-(batch, channel) means.
    means = pl.pallas_call(
        _make_mean_kernel(1.0 / HW, hw_tile),
        out_shape=jax.ShapeDtypeStruct((B, C, 1), jnp.float32),
        grid_spec=pltpu.PrefetchScalarGridSpec(
            num_scalar_prefetch=0,
            grid=(B, n_hw),
            in_specs=[pl.BlockSpec((1, C, hw_tile), lambda b, h: (b, 0, h))],
            out_specs=pl.BlockSpec((1, C, 1), lambda b, h: (b, 0, 0)),
            scratch_shapes=[pltpu.VMEM((1, C, 128), jnp.float32)],
        ),
        compiler_params=pltpu.CompilerParams(
            dimension_semantics=("parallel", "arbitrary"),
            vmem_limit_bytes=vmem_limit,
        ),
    )(x3p)

    # Tiny excitation MLP in plain JAX (in-kernel it would be an M=1 MXU call
    # per batch while its weight blocks occupy double-buffered VMEM).
    q = means[:, :, 0]                                       # (B, C) f32
    h = jax.nn.relu(q @ w1 + b1)
    gates = jax.nn.sigmoid(h @ w2 + b2).astype(x.dtype).reshape(B, C, 1)

    # Pass 2: rescale x by the per-(batch, channel) gates.
    out3p = pl.pallas_call(
        _scale_kernel,
        out_shape=jax.ShapeDtypeStruct((B, C, HW_pad), x.dtype),
        grid_spec=pltpu.PrefetchScalarGridSpec(
            num_scalar_prefetch=0,
            grid=(B, n_hw),
            in_specs=[
                pl.BlockSpec((1, C, hw_tile), lambda b, h: (b, 0, h)),
                pl.BlockSpec((1, C, 1), lambda b, h: (b, 0, 0)),
            ],
            out_specs=pl.BlockSpec((1, C, hw_tile), lambda b, h: (b, 0, h)),
        ),
        compiler_params=pltpu.CompilerParams(
            dimension_semantics=("parallel", "parallel"),
            vmem_limit_bytes=vmem_limit,
        ),
    )(x3p, gates)

    out3 = out3p if HW_pad == HW else out3p[:, :, :HW]
    return out3.reshape(B, C, H, W)


def sae_reference(x, w1, b1, w2, b2):
    """Pure-JAX reference mirroring the PyTorch forward."""
    B, C, H, W = x.shape
    q = jnp.mean(x.reshape(B, C, -1), axis=2)
    h = jax.nn.relu(q @ w1 + b1)
    g = jax.nn.sigmoid(h @ w2 + b2)
    return x * g[:, :, None, None]


if __name__ == "__main__":
    B, C, H, W = 2, 4, 16, 16
    reduction_ratio = 2
    Cr = C // reduction_ratio

    key = jax.random.PRNGKey(0)
    kx, k1, k2, k3, k4 = jax.random.split(key, 5)

    x = jax.random.normal(kx, (B, C, H, W), dtype=jnp.float32)
    # Deterministic synthetic parameters (fc1: C -> Cr, fc2: Cr -> C),
    # stored transposed ((in, out)) vs. PyTorch's nn.Linear weight layout.
    w1 = 0.1 * jax.random.normal(k1, (C, Cr), dtype=jnp.float32)
    b1 = 0.1 * jax.random.normal(k2, (Cr,), dtype=jnp.float32)
    w2 = 0.1 * jax.random.normal(k3, (Cr, C), dtype=jnp.float32)
    b2 = 0.1 * jax.random.normal(k4, (C,), dtype=jnp.float32)

    ref = sae_reference(x, w1, b1, w2, b2)

    # 1) Fused single-pass path (per-batch slice easily fits VMEM).
    out_fused = sae_forward(x, w1, b1, w2, b2)
    jax.block_until_ready(out_fused)
    np.testing.assert_allclose(np.asarray(out_fused), np.asarray(ref),
                               rtol=1e-5, atol=1e-5)

    # 2) Two-pass fallback with multiple spatial tiles (HW=256 -> two 128-lane
    #    tiles) to exercise the cross-tile accumulator + finalize logic.
    out_two_pass = sae_forward(x, w1, b1, w2, b2, hw_tile=128, allow_fused=False)
    jax.block_until_ready(out_two_pass)
    np.testing.assert_allclose(np.asarray(out_two_pass), np.asarray(ref),
                               rtol=1e-5, atol=1e-5)

    # 3) Two-pass fallback with a non-128-aligned spatial extent (HW=100) to
    #    exercise the host-side zero padding + output slicing.
    x_odd = jax.random.normal(kx, (B, C, 10, 10), dtype=jnp.float32)
    ref_odd = sae_reference(x_odd, w1, b1, w2, b2)
    out_odd = sae_forward(x_odd, w1, b1, w2, b2, allow_fused=False)
    jax.block_until_ready(out_odd)
    np.testing.assert_allclose(np.asarray(out_odd), np.asarray(ref_odd),
                               rtol=1e-5, atol=1e-5)

    print("KERNEL_OK")
</pallas_src>

<mosaic_0001>
module attributes {stable_mosaic.version = 11 : i64} {
  func.func @kernel(%arg0: i32, %arg1: memref<1x4x256xf32, #tpu.memory_space<vmem>>, %arg2: memref<4x2xf32, #tpu.memory_space<vmem>>, %arg3: memref<1x2xf32, #tpu.memory_space<vmem>>, %arg4: memref<2x4xf32, #tpu.memory_space<vmem>>, %arg5: memref<1x4xf32, #tpu.memory_space<vmem>>, %arg6: memref<1x4x256xf32, #tpu.memory_space<vmem>>, %arg7: memref<1x4x128xf32, #tpu.memory_space<vmem>>) attributes {dimension_semantics = [#tpu.dimension_semantics<parallel>], iteration_bounds = array<i64: 2>, scalar_prefetch = 0 : i64, scratch_operands = 1 : i64, tpu.core_type = #tpu.core_type<tc>, window_params = [{transform_indices = @transform_0, window_bounds = array<i64: 1, 4, 256>}, {pipeline_mode = #tpu.pipeline_mode<synchronous>, transform_indices = @transform_1, window_bounds = array<i64: 4, 2>}, {pipeline_mode = #tpu.pipeline_mode<synchronous>, transform_indices = @transform_2, window_bounds = array<i64: 1, 2>}, {pipeline_mode = #tpu.pipeline_mode<synchronous>, transform_indices = @transform_3, window_bounds = array<i64: 2, 4>}, {pipeline_mode = #tpu.pipeline_mode<synchronous>, transform_indices = @transform_4, window_bounds = array<i64: 1, 4>}, {transform_indices = @transform_5, window_bounds = array<i64: 1, 4, 256>}]} {
    %cst = arith.constant 0.000000e+00 : f32
    %0 = vector.broadcast %cst : f32 to vector<1x4x128xf32>
    %c0 = arith.constant 0 : index
    %c0_0 = arith.constant 0 : index
    %c0_1 = arith.constant 0 : index
    %1 = vector.load %arg7[%c0, %c0_0, %c0_1] : memref<1x4x128xf32, #tpu.memory_space<vmem>>, vector<1x4x128xf32>
    tpu.vector_store %arg7[%c0, %c0_0, %c0_1], %0 {strides = array<i32>} : memref<1x4x128xf32, #tpu.memory_space<vmem>>, vector<1x4x128xf32>,
    %c0_2 = arith.constant 0 : index
    %c0_3 = arith.constant 0 : index
    %c0_4 = arith.constant 0 : index
    %2 = vector.load %arg7[%c0_2, %c0_3, %c0_4] : memref<1x4x128xf32, #tpu.memory_space<vmem>>, vector<1x4x128xf32>
    %c0_5 = arith.constant 0 : index
    %c0_6 = arith.constant 0 : index
    %c0_7 = arith.constant 0 : index
    %3 = vector.load %arg1[%c0_5, %c0_6, %c0_7] : memref<1x4x256xf32, #tpu.memory_space<vmem>>, vector<1x4x128xf32>
    %4 = arith.addf %2, %3 : vector<1x4x128xf32>
    %c0_8 = arith.constant 0 : index
    %c0_9 = arith.constant 0 : index
    %c0_10 = arith.constant 0 : index
    %5 = vector.load %arg7[%c0_8, %c0_9, %c0_10] : memref<1x4x128xf32, #tpu.memory_space<vmem>>, vector<1x4x128xf32>
    tpu.vector_store %arg7[%c0_8, %c0_9, %c0_10], %4 {strides = array<i32>} : memref<1x4x128xf32, #tpu.memory_space<vmem>>, vector<1x4x128xf32>,
    %c0_11 = arith.constant 0 : index
    %c0_12 = arith.constant 0 : index
    %c0_13 = arith.constant 0 : index
    %6 = vector.load %arg7[%c0_11, %c0_12, %c0_13] : memref<1x4x128xf32, #tpu.memory_space<vmem>>, vector<1x4x128xf32>
    %c0_14 = arith.constant 0 : index
    %c0_15 = arith.constant 0 : index
    %c128 = arith.constant 128 : index
    %7 = vector.load %arg1[%c0_14, %c0_15, %c128] : memref<1x4x256xf32, #tpu.memory_space<vmem>>, vector<1x4x128xf32>
    %8 = arith.addf %6, %7 : vector<1x4x128xf32>
    %c0_16 = arith.constant 0 : index
    %c0_17 = arith.constant 0 : index
    %c0_18 = arith.constant 0 : index
    %9 = vector.load %arg7[%c0_16, %c0_17, %c0_18] : memref<1x4x128xf32, #tpu.memory_space<vmem>>, vector<1x4x128xf32>
    tpu.vector_store %arg7[%c0_16, %c0_17, %c0_18], %8 {strides = array<i32>} : memref<1x4x128xf32, #tpu.memory_space<vmem>>, vector<1x4x128xf32>,
    %c0_19 = arith.constant 0 : index
    %c0_20 = arith.constant 0 : index
    %c0_21 = arith.constant 0 : index
    %10 = vector.load %arg7[%c0_19, %c0_20, %c0_21] : memref<1x4x128xf32, #tpu.memory_space<vmem>>, vector<1x4x128xf32>
    %cst_22 = arith.constant dense<0.000000e+00> : vector<1x4xf32>
    %11 = vector.multi_reduction <add>, %10, %cst_22 [2] : vector<1x4x128xf32> to vector<1x4xf32>
    %cst_23 = arith.constant 3.906250e-03 : f32
    %12 = vector.broadcast %cst_23 : f32 to vector<1x4xf32>
    %13 = arith.mulf %11, %12 : vector<1x4xf32>
    %c0_24 = arith.constant 0 : index
    %c0_25 = arith.constant 0 : index
    %14 = vector.load %arg2[%c0_24, %c0_25] : memref<4x2xf32, #tpu.memory_space<vmem>>, vector<4x2xf32>
    %cst_26 = arith.constant dense<0.000000e+00> : vector<1x2xf32>
    %15 = tpu.matmul %13, %14, %cst_26 {dimension_numbers = #tpu.dot_dimension_numbers<[1], [0], [0], [1], [0, 0, 1, 1], [], []>} : vector<1x4xf32>, vector<4x2xf32>, vector<1x2xf32> -> vector<1x2xf32>
    %c0_27 = arith.constant 0 : index
    %c0_28 = arith.constant 0 : index
    %16 = vector.load %arg3[%c0_27, %c0_28] : memref<1x2xf32, #tpu.memory_space<vmem>>, vector<1x2xf32>
    %17 = arith.addf %15, %16 : vector<1x2xf32>
    %cst_29 = arith.constant 0.000000e+00 : f32
    %18 = vector.broadcast %cst_29 : f32 to vector<1x2xf32>
    %19 = arith.maximumf %17, %18 : vector<1x2xf32>
    %c0_30 = arith.constant 0 : index
    %c0_31 = arith.constant 0 : index
    %20 = vector.load %arg4[%c0_30, %c0_31] : memref<2x4xf32, #tpu.memory_space<vmem>>, vector<2x4xf32>
    %cst_32 = arith.constant dense<0.000000e+00> : vector<1x4xf32>
    %21 = tpu.matmul %19, %20, %cst_32 {dimension_numbers = #tpu.dot_dimension_numbers<[1], [0], [0], [1], [0, 0, 1, 1], [], []>} : vector<1x2xf32>, vector<2x4xf32>, vector<1x4xf32> -> vector<1x4xf32>
    %c0_33 = arith.constant 0 : index
    %c0_34 = arith.constant 0 : index
    %22 = vector.load %arg5[%c0_33, %c0_34] : memref<1x4xf32, #tpu.memory_space<vmem>>, vector<1x4xf32>
    %23 = arith.addf %21, %22 : vector<1x4xf32>
    %24 = arith.negf %23 : vector<1x4xf32>
    %25 = math.exp %24 : vector<1x4xf32>
    %cst_35 = arith.constant 1.000000e+00 : f32
    %26 = vector.broadcast %cst_35 : f32 to vector<1x4xf32>
    %27 = arith.addf %26, %25 : vector<1x4xf32>
    %28 = arith.divf %26, %27 : vector<1x4xf32>
    %c0_36 = arith.constant 0 : index
    %c0_37 = arith.constant 0 : index
    %c0_38 = arith.constant 0 : index
    %29 = vector.load %arg1[%c0_36, %c0_37, %c0_38] : memref<1x4x256xf32, #tpu.memory_space<vmem>>, vector<1x4x256xf32>
    %30 = vector.shape_cast %28 : vector<1x4xf32> to vector<1x4x1xf32>
    %31 = vector.broadcast %30 : vector<1x4x1xf32> to vector<1x4x256xf32>
    %32 = arith.mulf %29, %31 : vector<1x4x256xf32>
    %c0_39 = arith.constant 0 : index
    %c0_40 = arith.constant 0 : index
    %c0_41 = arith.constant 0 : index
    %33 = vector.load %arg6[%c0_39, %c0_40, %c0_41] : memref<1x4x256xf32, #tpu.memory_space<vmem>>, vector<1x4x256xf32>
    tpu.vector_store %arg6[%c0_39, %c0_40, %c0_41], %32 {strides = array<i32>} : memref<1x4x256xf32, #tpu.memory_space<vmem>>, vector<1x4x256xf32>,
    return
  }
  func.func @transform_0(%arg0: i32) -> (i32, i32, i32) {
    %c0_i32 = arith.constant 0 : i32
    %c0_i32_0 = arith.constant 0 : i32
    %c0_i32_1 = arith.constant 0 : i32
    return %arg0, %c0_i32, %c0_i32_0 : i32, i32, i32
  }
  func.func @transform_1(%arg0: i32) -> (i32, i32) {
    %c0_i32 = arith.constant 0 : i32
    %c0_i32_0 = arith.constant 0 : i32
    %c0_i32_1 = arith.constant 0 : i32
    return %c0_i32, %c0_i32_0 : i32, i32
  }
  func.func @transform_2(%arg0: i32) -> (i32, i32) {
    %c0_i32 = arith.constant 0 : i32
    %c0_i32_0 = arith.constant 0 : i32
    %c0_i32_1 = arith.constant 0 : i32
    return %c0_i32, %c0_i32_0 : i32, i32
  }
  func.func @transform_3(%arg0: i32) -> (i32, i32) {
    %c0_i32 = arith.constant 0 : i32
    %c0_i32_0 = arith.constant 0 : i32
    %c0_i32_1 = arith.constant 0 : i32
    return %c0_i32, %c0_i32_0 : i32, i32
  }
  func.func @transform_4(%arg0: i32) -> (i32, i32) {
    %c0_i32 = arith.constant 0 : i32
    %c0_i32_0 = arith.constant 0 : i32
    %c0_i32_1 = arith.constant 0 : i32
    return %c0_i32, %c0_i32_0 : i32, i32
  }
  func.func @transform_5(%arg0: i32) -> (i32, i32, i32) {
    %c0_i32 = arith.constant 0 : i32
    %c0_i32_0 = arith.constant 0 : i32
    %c0_i32_1 = arith.constant 0 : i32
    return %arg0, %c0_i32, %c0_i32_0 : i32, i32, i32
  }
}

</mosaic_0001>

<llo_original>
// kernel: tpu_custom_call.1
$region0: #{tpu_custom_call.1}
  #allocation0 [shape = 'u32[]', space=smem, size = 0x4, offset = 0x4, fixed_abs, tag = 'smem constant byte address 0x4 - core index']
  #allocation1 [shape = 'u32[72,128]{1,0:T(1,128)}', space=vmem, size = 0x9000, scoped, tag = 'internal scratch']
  #allocation2 [shape = 'f32[1,4,128]{2,1,0:T(4,128)}', space=vmem, size = 0x800, scoped, tag = 'scratch operand']
  %s0 = inlined_call_operand.hbm [shape: f32[2,4,256], index: 0, kind: input, shape index: {}]
  %s1 = inlined_call_operand.vmem [shape: f32[4,2], index: 1, kind: input, shape index: {}]
  %s2 = inlined_call_operand.vmem [shape: f32[1,2], index: 2, kind: input, shape index: {}]
  %s3 = inlined_call_operand.vmem [shape: f32[2,4], index: 3, kind: input, shape index: {}]
  %s4 = inlined_call_operand.vmem [shape: f32[1,4], index: 4, kind: input, shape index: {}]
  %s5 = inlined_call_operand.hbm [shape: f32[2,4,256], index: 5, kind: output, shape index: {}]
  %s6 = sld [smem:[#allocation0]]
  $region57: #{tpu_custom_call.1} parent=0
    _
  %s8 = ssub.s32 1, %s6
  %s9 = scalar_select 0, %s8, %s6
  $region1: #{tpu_custom_call.1} parent=0
    #allocation3 [shape = 'u8[8192]{0}', space=vmem, size = 0x2000, scoped, tag = 'input window, operand 0']
    #allocation4 [shape = 's32[2]{0}', space=sflag, size = 0x8, scoped, tag = 'scoped memory for tpu_custom_call.1']
    #allocation5 [shape = 's32[2]{0}', space=sflag, size = 0x8, scoped, tag = 'scoped memory for tpu_custom_call.1']
    #allocation6 [shape = 'u8[8192]{0}', space=vmem, size = 0x2000, scoped, tag = 'output window, operand 0']
    %10 = vsyncpa [#allocation4], 0
    %s11 = scalar_lea.sflag [#allocation4], 1
    %12 = vsyncpa %s11, 0
    %13 = vsyncpa [#allocation5], 0
    %s14 = scalar_lea.sflag [#allocation5], 1
    %15 = vsyncpa %s14, 0
    loop: start=0, step=1, limit=4
    $region2: #{tpu_custom_call.1} parent=1 // loop_pre_header
      _
    $region3: #{tpu_custom_call.1} parent=1 // loop_header
      %s17 = sphi 0, %s21
      %p18 = scmp.ge.s32.totalorder %s17, 4
      %s27 = sphi 0, %s29
      %s30 = sphi 0, %s27
      %s31 = sphi 0, %s30
      %s47 = sphi 0, %s31
      %s51 = sphi 0, %s51
      %s53 = sphi 0, %s51
      %s54 = sphi 0, %s53
      %s68 = sphi 0, %s54
      %s72 = sphi 0, %s72
      %s74 = sphi 0, %s72
      %s75 = sphi 0, %s74
      %s89 = sphi 0, %s75
      %s93 = sphi 0, %s93
      %s95 = sphi 0, %s93
      %s96 = sphi 0, %s95
      %s110 = sphi 0, %s96
      %s114 = sphi 0, %s114
      %s116 = sphi 0, %s114
      %s117 = sphi 0, %s116
      %s131 = sphi 0, %s117
      %s137 = sphi 0, %s139
      %s140 = sphi 0, %s137
      %s141 = sphi 0, %s140
      %s157 = sphi 0, %s141
    $region4: #{tpu_custom_call.1} parent=1 // loop_header_branch
      %20 = sbr.rel (%p18) target = $region8
    $region5: #{tpu_custom_call.1} parent=1 // loop_body
      %s22 = ssub.s32 %s17, 1
      %s23 = ssub.s32 %s17, 2
      %s24 = sadd.s32 %s17, 1
      %s25 = ssub.s32 %s17, %s24
      %p26 = scmp.eq.s32.totalorder %s25, 0
      %s28 = sadd.s32 %s27, 1
      %s29 = scalar_select %p26, %s27, %s28
      %p32 = pneg %p26
      %p33 = scmp.eq.s32.totalorder %s17, 1
      %p34 = por %p32, %p33
      %p35 = scmp.ne.s32.totalorder %s27, %s30
      %p36 = scmp.eq.s32.totalorder %s17, 0
      %p37 = por %p35, %p36
      %p38 = scmp.ne.s32.totalorder %s27, %s30
      %p39 = scmp.eq.s32.totalorder %s22, 1
      %p40 = por %p38, %p39
      %p41 = scmp.ne.s32.totalorder %s30, %s31
      %p42 = scmp.eq.s32.totalorder %s22, 0
      %p43 = por %p41, %p42
      %p44 = scmp.ne.s32.totalorder %s30, %s31
      %p45 = scmp.eq.s32.totalorder %s23, 1
      %p46 = por %p44, %p45
      %p48 = scmp.ne.s32.totalorder %s31, %s47
      %p49 = scmp.eq.s32.totalorder %s23, 0
      %p50 = por %p48, %p49
      %s52 = sadd.s32 %s51, 1
      %p55 = scmp.eq.s32.totalorder %s17, 1
      %p56 = scmp.ne.s32.totalorder %s51, %s53
      %p57 = scmp.eq.s32.totalorder %s17, 0
      %p58 = por %p56, %p57
      %p59 = scmp.ne.s32.totalorder %s51, %s53
      %p60 = scmp.eq.s32.totalorder %s22, 1
      %p61 = por %p59, %p60
      %p62 = scmp.ne.s32.totalorder %s53, %s54
      %p63 = scmp.eq.s32.totalorder %s22, 0
      %p64 = por %p62, %p63
      %p65 = scmp.ne.s32.totalorder %s53, %s54
      %p66 = scmp.eq.s32.totalorder %s23, 1
      %p67 = por %p65, %p66
      %p69 = scmp.ne.s32.totalorder %s54, %s68
      %p70 = scmp.eq.s32.totalorder %s23, 0
      %p71 = por %p69, %p70
      %s73 = sadd.s32 %s72, 1
      %p76 = scmp.eq.s32.totalorder %s17, 1
      %p77 = scmp.ne.s32.totalorder %s72, %s74
      %p78 = scmp.eq.s32.totalorder %s17, 0
      %p79 = por %p77, %p78
      %p80 = scmp.ne.s32.totalorder %s72, %s74
      %p81 = scmp.eq.s32.totalorder %s22, 1
      %p82 = por %p80, %p81
      %p83 = scmp.ne.s32.totalorder %s74, %s75
      %p84 = scmp.eq.s32.totalorder %s22, 0
      %p85 = por %p83, %p84
      %p86 = scmp.ne.s32.totalorder %s74, %s75
      %p87 = scmp.eq.s32.totalorder %s23, 1
      %p88 = por %p86, %p87
      %p90 = scmp.ne.s32.totalorder %s75, %s89
      %p91 = scmp.eq.s32.totalorder %s23, 0
      %p92 = por %p90, %p91
      %s94 = sadd.s32 %s93, 1
      %p97 = scmp.eq.s32.totalorder %s17, 1
      %p98 = scmp.ne.s32.totalorder %s93, %s95
      %p99 = scmp.eq.s32.totalorder %s17, 0
      %p100 = por %p98, %p99
      %p101 = scmp.ne.s32.totalorder %s93, %s95
      %p102 = scmp.eq.s32.totalorder %s22, 1
      %p103 = por %p101, %p102
      %p104 = scmp.ne.s32.totalorder %s95, %s96
      %p105 = scmp.eq.s32.totalorder %s22, 0
      %p106 = por %p104, %p105
      %p107 = scmp.ne.s32.totalorder %s95, %s96
      %p108 = scmp.eq.s32.totalorder %s23, 1
      %p109 = por %p107, %p108
      %p111 = scmp.ne.s32.totalorder %s96, %s110
      %p112 = scmp.eq.s32.totalorder %s23, 0
      %p113 = por %p111, %p112
      %s115 = sadd.s32 %s114, 1
      %p118 = scmp.eq.s32.totalorder %s17, 1
      %p119 = scmp.ne.s32.totalorder %s114, %s116
      %p120 = scmp.eq.s32.totalorder %s17, 0
      %p121 = por %p119, %p120
      %p122 = scmp.ne.s32.totalorder %s114, %s116
      %p123 = scmp.eq.s32.totalorder %s22, 1
      %p124 = por %p122, %p123
      %p125 = scmp.ne.s32.totalorder %s116, %s117
      %p126 = scmp.eq.s32.totalorder %s22, 0
      %p127 = por %p125, %p126
      %p128 = scmp.ne.s32.totalorder %s116, %s117
      %p129 = scmp.eq.s32.totalorder %s23, 1
      %p130 = por %p128, %p129
      %p132 = scmp.ne.s32.totalorder %s117, %s131
      %p133 = scmp.eq.s32.totalorder %s23, 0
      %p134 = por %p132, %p133
      %s135 = ssub.s32 %s17, %s24
      %p136 = scmp.eq.s32.totalorder %s135, 0
      %s138 = sadd.s32 %s137, 1
      %s139 = scalar_select %p136, %s137, %s138
      %p142 = pneg %p136
      %p143 = scmp.eq.s32.totalorder %s17, 1
      %p144 = por %p142, %p143
      %p145 = scmp.ne.s32.totalorder %s137, %s140
      %p146 = scmp.eq.s32.totalorder %s17, 0
      %p147 = por %p145, %p146
      %p148 = scmp.ne.s32.totalorder %s137, %s140
      %p149 = scmp.eq.s32.totalorder %s22, 1
      %p150 = por %p148, %p149
      %p151 = scmp.ne.s32.totalorder %s140, %s141
      %p152 = scmp.eq.s32.totalorder %s22, 0
      %p153 = por %p151, %p152
      %p154 = scmp.ne.s32.totalorder %s140, %s141
      %p155 = scmp.eq.s32.totalorder %s23, 1
      %p156 = por %p154, %p155
      %p158 = scmp.ne.s32.totalorder %s141, %s157
      %p159 = scmp.eq.s32.totalorder %s23, 0
      %p160 = por %p158, %p159
      %p161 = scmp.le.s32.totalorder 1, %s17
      %p162 = scmp.lt.s32.totalorder %s17, 3
      %p163 = pnand %p161, %p162
      %p164 = pneg %p163
      // Predicated region
      $region9: #{tpu_custom_call.1} parent=5 // pred_check
        _
      $region10: #{tpu_custom_call.1} parent=5 // pred_check_branch
        %166 = sbr.rel (%p163) target = $region12
      $region11: #{tpu_custom_call.1} parent=5 // pred_region
        %s167 = ssub.s32 %s17, 1
        // Predicated region
        $region13: #{tpu_custom_call.1} parent=11 // pred_check
          %p168 = pneg %p64
        $region14: #{tpu_custom_call.1} parent=11 // pred_check_branch
          %170 = sbr.rel (%p168) target = $region16
        $region15: #{tpu_custom_call.1} parent=11 // pred_region
          _
        $region16: #{tpu_custom_call.1} parent=11 // pred_fallthru
          _
        // Predicated region
        $region17: #{tpu_custom_call.1} parent=11 // pred_check
          %p171 = pneg %p85
        $region18: #{tpu_custom_call.1} parent=11 // pred_check_branch
          %173 = sbr.rel (%p171) target = $region20
        $region19: #{tpu_custom_call.1} parent=11 // pred_region
          _
        $region20: #{tpu_custom_call.1} parent=11 // pred_fallthru
          _
        // Predicated region
        $region21: #{tpu_custom_call.1} parent=11 // pred_check
          %p174 = pneg %p106
        $region22: #{tpu_custom_call.1} parent=11 // pred_check_branch
          %176 = sbr.rel (%p174) target = $region24
        $region23: #{tpu_custom_call.1} parent=11 // pred_region
          _
        $region24: #{tpu_custom_call.1} parent=11 // pred_fallthru
          _
        // Predicated region
        $region25: #{tpu_custom_call.1} parent=11 // pred_check
          %p177 = pneg %p127
        $region26: #{tpu_custom_call.1} parent=11 // pred_check_branch
          %179 = sbr.rel (%p177) target = $region28
        $region27: #{tpu_custom_call.1} parent=11 // pred_region
          _
        $region28: #{tpu_custom_call.1} parent=11 // pred_fallthru
          _
      $region12: #{tpu_custom_call.1} parent=5 // pred_fallthru
        _
      %p180 = scmp.lt.s32.totalorder %s17, 2
      // Predicated region
      $region29: #{tpu_custom_call.1} parent=5 // pred_check
        %p181 = pneg %p180
      $region30: #{tpu_custom_call.1} parent=5 // pred_check_branch
        %183 = sbr.rel (%p181) target = $region32
      $region31: #{tpu_custom_call.1} parent=5 // pred_region
        // Predicated region
        $region33: #{tpu_custom_call.1} parent=31 // pred_check
          %p184 = pneg %p37
        $region34: #{tpu_custom_call.1} parent=31 // pred_check_branch
          %186 = sbr.rel (%p184) target = $region36
        $region35: #{tpu_custom_call.1} parent=31 // pred_region
          %s187 = sand.u32 %s27, 1
          %s188 = scalar_lea.sflag [#allocation4], %s187
          %s189 = sand.u32 %s27, 1
          %s190 = smul.addr %s189, 8
          %s191 = scalar_lea.vmem [#allocation3], %s190
          %193 = vsyncadd %s188, 0
          %s194 = smul.addr %s17, 2
          %s195 = smul.addr %s194, 4
          %s196 = scalar_lea.hbm %s0, %s195
          %s198 = sshll.u32 %s196, 4
          %s199 = int_to_ptr.hbm [resolvable:$true] %s198
          %s200 = sshll.u32 %s191, 4
          %s201 = int_to_ptr.vmem [resolvable:$true] %s200
          %203 = dma.hbm_to_vmem [thread:$0]  %s199, 128, %s201, %s188
        $region36: #{tpu_custom_call.1} parent=31 // pred_fallthru
          _
      $region32: #{tpu_custom_call.1} parent=5 // pred_fallthru
        _
      %p204 = scmp.le.s32.totalorder 1, %s17
      %p205 = scmp.lt.s32.totalorder %s17, 3
      %p206 = pnand %p204, %p205
      %p207 = pneg %p206
      // Predicated region
      $region37: #{tpu_custom_call.1} parent=5 // pred_check
        _
      $region38: #{tpu_custom_call.1} parent=5 // pred_check_branch
        %209 = sbr.rel (%p206) target = $region40
      $region39: #{tpu_custom_call.1} parent=5 // pred_region
        %s210 = ssub.s32 %s17, 1
        %s211 = sand.u32 %s30, 1
        %s212 = scalar_lea.sflag [#allocation4], %s211
        %s213 = sand.u32 %s30, 1
        %s214 = smul.addr %s213, 8
        %s215 = scalar_lea.vmem [#allocation3], %s214
        // Predicated region
        $region41: #{tpu_custom_call.1} parent=39 // pred_check
          %p216 = pneg %p43
        $region42: #{tpu_custom_call.1} parent=39 // pred_check_branch
          %218 = sbr.rel (%p216) target = $region44
        $region43: #{tpu_custom_call.1} parent=39 // pred_region
          %220 = dma.done %s212, 128
        $region44: #{tpu_custom_call.1} parent=39 // pred_fallthru
          _
        %s221 = sand.u32 %s30, 1
        %s222 = scalar_lea.sflag [#allocation4], %s221
        %s223 = sand.u32 %s30, 1
        %s224 = smul.addr %s223, 8
        %s225 = scalar_lea.vmem [#allocation3], %s224
        %p226 = pneg %p43
        %p227 = pneg %p40
        %p228 = pneg %p64
        %p229 = pneg %p61
        %p230 = pneg %p85
        %p231 = pneg %p82
        %p232 = pneg %p106
        %p233 = pneg %p103
        %p234 = pneg %p127
        %p235 = pneg %p124
        %p236 = pneg %p153
        %p237 = pneg %p150
        %s238 = sand.u32 %s140, 1
        %s239 = scalar_lea.sflag [#allocation5], %s238
        %s240 = sand.u32 %s140, 1
        %s241 = smul.addr %s240, 8
        %s242 = scalar_lea.vmem [#allocation6], %s241
        %243 = vst [vmem:[#allocation2] sm:$0xf] 0.0
        %v244 = vld [vmem:[#allocation2] sm:$0xf]
        %v245 = vld [vmem:[%s215] sm:$0xf]
        %v246 = vadd.f32 %v244, %v245
        %247 = vst [vmem:[#allocation2] sm:$0xf] %v246
        %v248 = vld [vmem:[#allocation2] sm:$0xf]
        %v249 = vld [vmem:[%s215 + $0x4] sm:$0xf]
        %v250 = vadd.f32 %v248, %v249
        %251 = vst [vmem:[#allocation2] sm:$0xf] %v250
        %v252 = vld [vmem:[#allocation2] sm:$0xf]
        %vm253 = vcmask 1043456
        %v254 = vsel %vm253, %v252, 0.0
        %255 = vadd.xlane.f32.xlu0 %v254
        %v256 = vpop.xlane.xlu0 %255
        %v257 = vmul.f32 %v256, 0.00390625
        %v258 = vld [vmem:[%s1] sm:$0xf]
        %v259 = vld [vmem:[%s2] sm:$0x1]
        %v261 = vlaneseq
        %v262 = vand.u32 %v261, 127
        %v263 = vperm.slane %v257, %v262
        %vm264 = vcmask 31744
        %v265 = vsel %vm264, %v263, 0
        %v268 = vsel %vm253, %v258, 0
        %270 = vmatpush.msra.mxu0 0.0
        %271 = vmatpush.msra.mxu0 0.0
        %272 = vmatpush.msra.mxu0 0.0
        %273 = vmatpush.msra.mxu0 0.0
        %274 = vmatpush.msra.mxu0 0.0
        %275 = vmatpush.msra.mxu0 0.0
        %276 = vmatpush.msra.mxu0 0.0
        %277 = vmatpush.msra.mxu0 0.0
        %278 = vmatpush.msra.mxu0 0.0
        %279 = vmatpush.msra.mxu0 0.0
        %280 = vmatpush.msra.mxu0 0.0
        %281 = vmatpush.msra.mxu0 0.0
        %282 = vmatpush.msra.mxu0 0.0
        %283 = vmatpush.msra.mxu0 0.0
        %284 = vmatpush.msra.mxu0 0.0
        %285 = vmatpush.msra.mxu0 %v268
        %286 = vmatmul.f32.gmra.mxu0 %v265
        %v287 = vpop.f32.mrf.mxu0
        %v288 = vadd.f32 %v259, %v287
        %289 = vdwg.mxu0
        %v290 = vmax.f32 %v288, 0.0
        %v291 = vld [vmem:[%s3] sm:$0x3]
        %v292 = vld [vmem:[%s4] sm:$0x1]
        %vm293 = vcmask 15360
        %v295 = vsel %vm293, %v290, 0
        %vm297 = vcmask 1041408
        %v299 = vsel %vm297, %v291, 0
        %301 = vmatpush.msra.mxu0 0.0
        %302 = vmatpush.msra.mxu0 0.0
        %303 = vmatpush.msra.mxu0 0.0
        %304 = vmatpush.msra.mxu0 0.0
        %305 = vmatpush.msra.mxu0 0.0
        %306 = vmatpush.msra.mxu0 0.0
        %307 = vmatpush.msra.mxu0 0.0
        %308 = vmatpush.msra.mxu0 0.0
        %309 = vmatpush.msra.mxu0 0.0
        %310 = vmatpush.msra.mxu0 0.0
        %311 = vmatpush.msra.mxu0 0.0
        %312 = vmatpush.msra.mxu0 0.0
        %313 = vmatpush.msra.mxu0 0.0
        %314 = vmatpush.msra.mxu0 0.0
        %315 = vmatpush.msra.mxu0 0.0
        %316 = vmatpush.msra.mxu0 %v299
        %317 = vmatmul.f32.gmra.mxu0 %v295
        %v318 = vpop.f32.mrf.mxu0
        %v319 = vadd.f32 %v292, %v318
        %320 = vdwg.mxu0
        %v321 = vxor.u32 %v319, 2147483648
        %v322 = vmul.f32 %v321, 1.442695
        %v323 = vpow.pop %v322
        %v324 = vadd.f32 %v323, 1.0
        %v325 = vrcp.pop %v324
        %v326 = vmul.f32 %v324, %v325
        %v327 = vsub.f32 1.0, %v326
        %v328 = vmul.f32 %v325, %v327
        %v329 = vadd.f32 %v325, %v328
        %vm330 = vweird.f32 %v324
        %vm331 = vweird.f32 %v325
        %vm332 = vmor %vm330, %vm331
        %v333 = vsel %vm332, %v325, %v329
        %v334 = vand.u32 2147483647, %v324
        %vm335 = vcmp.eq.f32.partialorder %v334, 8.507059e+37
        %v336 = vand.u32 %v324, 2147483648
        %v337 = vor.u32 1.1754944e-38, %v336
        %v338 = vsel %vm335, %v337, %v333
        %v339 = vmul.f32 1.0, %v338
        %v340 = vld [vmem:[%s215] sm:$0xff]
        %v341 = vperm.slane %v339, 0
        %v342 = vlaneseq
        %v343 = vshrl.u32 %v342, 7
        %345 = vset.pattern.permute.xlu0 %v343
        %346 = vperm.xlu0 %345, %v341
        %v347 = vpop.permute.xlu0 %346
        %v350 = vunpack.c.l.s4 839922192
        %v351 = vunpack.c.0.s8 %v350
        %v352 = vperm.slane %v347, %v351
        %v354 = vmul.f32 %v340, %v352
        %355 = vst [vmem:[%s242] sm:$0xff] %v354
        %s356 = sand.u32 %s140, 1
        %s357 = scalar_lea.sflag [#allocation5], %s356
        %s358 = sand.u32 %s140, 1
        %s359 = smul.addr %s358, 8
        %s360 = scalar_lea.vmem [#allocation6], %s359
        // Predicated region
        $region45: #{tpu_custom_call.1} parent=39 // pred_check
          %p361 = pneg %p150
        $region46: #{tpu_custom_call.1} parent=39 // pred_check_branch
          %363 = sbr.rel (%p361) target = $region48
        $region47: #{tpu_custom_call.1} parent=39 // pred_region
          %365 = vsyncadd %s357, 0
          %s366 = smul.addr %s22, 2
          %s367 = smul.addr %s366, 4
          %s368 = scalar_lea.hbm %s5, %s367
          %s370 = sshll.u32 %s360, 4
          %s371 = int_to_ptr.vmem [resolvable:$true] %s370
          %s372 = sshll.u32 %s368, 4
          %s373 = int_to_ptr.hbm [resolvable:$true] %s372
          %375 = dma.vmem_to_hbm [thread:$0]  %s371, 128, %s373, %s357
        $region48: #{tpu_custom_call.1} parent=39 // pred_fallthru
          _
      $region40: #{tpu_custom_call.1} parent=5 // pred_fallthru
        _
      %p376 = scmp.le.s32.totalorder 2, %s17
      // Predicated region
      $region49: #{tpu_custom_call.1} parent=5 // pred_check
        %p377 = pneg %p376
      $region50: #{tpu_custom_call.1} parent=5 // pred_check_branch
        %379 = sbr.rel (%p377) target = $region52
      $region51: #{tpu_custom_call.1} parent=5 // pred_region
        %s380 = ssub.s32 %s17, 2
        // Predicated region
        $region53: #{tpu_custom_call.1} parent=51 // pred_check
          %p381 = pneg %p156
        $region54: #{tpu_custom_call.1} parent=51 // pred_check_branch
          %383 = sbr.rel (%p381) target = $region56
        $region55: #{tpu_custom_call.1} parent=51 // pred_region
          %s384 = sand.u32 %s141, 1
          %s385 = scalar_lea.sflag [#allocation5], %s384
          %s386 = sand.u32 %s141, 1
          %s387 = smul.addr %s386, 8
          %s388 = scalar_lea.vmem [#allocation6], %s387
          %390 = dma.done %s385, 128
        $region56: #{tpu_custom_call.1} parent=51 // pred_fallthru
          _
      $region52: #{tpu_custom_call.1} parent=5 // pred_fallthru
        _
    $region6: #{tpu_custom_call.1} parent=1 // loop_footer
      %s21 = sadd.s32 1, %s17
    $region7: #{tpu_custom_call.1} parent=1 // loop_footer_branch
      %16 = sbr.rel target = $region3
    $region8: #{tpu_custom_call.1} parent=1 // loop_exit
      _
    %391 = vsyncpa [#allocation4], 1
    %s392 = scalar_lea.sflag [#allocation4], 1
    %393 = vsyncpa %s392, 1
    %394 = vsyncpa [#allocation5], 1
    %s395 = scalar_lea.sflag [#allocation5], 1
    %396 = vsyncpa %s395, 1

</llo_original>
